<compile_context>
chip_gen: v6e
topology: v6e:2x2x1
jax: 0.10.0
libtpu: 0.0.40
codegen_flags: <defaults>
</compile_context>

<pallas_src>
import jax
import jax.numpy as jnp
from jax.experimental import pallas as pl
from jax.experimental.pallas import tpu as pltpu


# ~2 MiB per input tile; with input + mask + output double-buffered this is
# ~12 MiB of VMEM worst case, under the 32 MiB limit requested below.
_TARGET_TILE_BYTES = 2 * 1024 * 1024
_VMEM_LIMIT_BYTES = 32 * 1024 * 1024


def _dropout_kernel(x_ref, co_ref, o_ref):
    # co is the pre-scaled keep mask (Bernoulli(q) / q). It is either the same
    # shape as the x tile (align_channel=False) or (block_rows, 1) and gets
    # lane-broadcast (XLU) across the tile (align_channel=True).
    o_ref[...] = x_ref[...] * co_ref[...]


def _pick_block(dim, cap, align):
    """Largest block for `dim` that is <= cap and either a multiple of `align`
    dividing `dim`, or the full extent `dim` itself (TPU (8,128) rule)."""
    cap = max(1, min(dim, cap))
    if dim <= cap:
        return dim
    best = None
    d = align
    while d <= cap:
        if dim % d == 0:
            best = d
        d += align
    # Fallback: full extent (always legal; only a VMEM concern for odd shapes).
    return best if best is not None else dim


def _choose_blocks(rows, cols, itemsize):
    tile_elems = max(128, _TARGET_TILE_BYTES // itemsize)
    # Lane axis: only tile it when it is a multiple of 128 (keeps tiles
    # lane-dense -> unmasked stores); otherwise take the full width.
    cap_cols = max(128, tile_elems // 8)
    if cols % 128 == 0 and cols > cap_cols:
        block_cols = _pick_block(cols, cap_cols, 128)
    else:
        block_cols = cols
    cap_rows = max(1, tile_elems // block_cols)
    block_rows = _pick_block(rows, cap_rows, 8)
    return block_rows, block_cols


def _lane_dense_cols(total, cap):
    """Largest multiple of 128 that divides `total` and is <= cap (or None)."""
    best = None
    d = 128
    limit = min(total, cap)
    while d <= limit:
        if total % d == 0:
            best = d
        d += 128
    return best


def dropout(x, key, p=0.5, align_channel=True, training=True):
    """Pallas implementation of Dropout.forward (NCHW input)."""
    assert x.ndim == 4, "Dropout expects a 4-D NCHW input"
    if (not training) or p == 0.0:
        return x  # eval mode: identity (matches the PyTorch module)

    q = 1.0 - p
    n, c, h, w = x.shape
    itemsize = x.dtype.itemsize
    inv_q = jnp.asarray(1.0 / q, dtype=x.dtype)

    if align_channel:
        # One keep/q scalar per (n, c) row, lane-broadcast across H*W.
        rows, cols = n * c, h * w
        x2 = x.reshape(rows, cols)
        co = jax.random.bernoulli(key, q, (rows, 1)).astype(x.dtype) * inv_q
        block_rows, block_cols = _choose_blocks(rows, cols, itemsize)
        co_spec = pl.BlockSpec((block_rows, 1), lambda i, j: (i, 0))
    else:
        # Per-element mask: use a lane-dense flattened view when possible.
        total = x.size
        tile_elems = max(128, _TARGET_TILE_BYTES // itemsize)
        cols = _lane_dense_cols(total, cap=max(128, tile_elems // 8))
        if cols is None:
            rows, cols = n * c, h * w
        else:
            rows = total // cols
        x2 = x.reshape(rows, cols)
        co = jax.random.bernoulli(key, q, (rows, cols)).astype(x.dtype) * inv_q
        block_rows, block_cols = _choose_blocks(rows, cols, itemsize)
        co_spec = pl.BlockSpec((block_rows, block_cols), lambda i, j: (i, j))

    grid = (rows // block_rows, cols // block_cols)

    cost = pl.CostEstimate(
        flops=x.size,
        transcendentals=0,
        bytes_accessed=x2.nbytes + co.nbytes + x2.nbytes,
    )

    out2 = pl.pallas_call(
        _dropout_kernel,
        out_shape=jax.ShapeDtypeStruct((rows, cols), x.dtype),
        grid=grid,
        in_specs=[
            pl.BlockSpec((block_rows, block_cols), lambda i, j: (i, j)),
            co_spec,
        ],
        out_specs=pl.BlockSpec((block_rows, block_cols), lambda i, j: (i, j)),
        compiler_params=pltpu.CompilerParams(
            dimension_semantics=("parallel", "parallel"),
            vmem_limit_bytes=_VMEM_LIMIT_BYTES,
        ),
        cost_estimate=cost,
    )(x2, co)

    return out2.reshape(n, c, h, w)


if __name__ == "__main__":
    key = jax.random.PRNGKey(0)
    kx, k1, k2 = jax.random.split(key, 3)
    x = jax.random.normal(kx, (2, 4, 16, 16), dtype=jnp.float32)

    p = 0.5
    q = 1.0 - p

    # Training mode, align_channel=True (module defaults).
    out = jax.block_until_ready(
        dropout(x, k1, p=p, align_channel=True, training=True))

    # Sanity check: every (n, c) slice is either all zeros or exactly x / q.
    out_np = jax.device_get(out)
    x_np = jax.device_get(x)
    for ni in range(x_np.shape[0]):
        for ci in range(x_np.shape[1]):
            o = out_np[ni, ci]
            kept = x_np[ni, ci] / q
            assert (abs(o).max() == 0.0) or (abs(o - kept).max() < 1e-5), \
                "channel mask is not aligned / scaled correctly"

    # align_channel=False: each element is either 0 or x / q.
    out_elem = jax.block_until_ready(
        dropout(x, k2, p=p, align_channel=False, training=True))
    oe = jax.device_get(out_elem)
    ok = (abs(oe) <= 1e-6) | (abs(oe - x_np / q) < 1e-5)
    assert ok.all(), "element mask is not Bernoulli(q)/q"

    # Eval mode: identity.
    out_eval = jax.block_until_ready(
        dropout(x, k1, p=p, align_channel=True, training=False))
    assert jnp.array_equal(out_eval, x)

    print("KERNEL_OK")
</pallas_src>

<mosaic_0001>
module attributes {stable_mosaic.version = 11 : i64} {
  func.func @_dropout_kernel(%arg0: i32, %arg1: i32, %arg2: memref<8x256xf32, #tpu.memory_space<vmem>>, %arg3: memref<8x1xf32, #tpu.memory_space<vmem>>, %arg4: memref<8x256xf32, #tpu.memory_space<vmem>>) attributes {dimension_semantics = [#tpu.dimension_semantics<parallel>, #tpu.dimension_semantics<parallel>], iteration_bounds = array<i64: 1, 1>, scalar_prefetch = 0 : i64, scratch_operands = 0 : i64, tpu.core_type = #tpu.core_type<tc>, window_params = [{transform_indices = @transform_0, window_bounds = array<i64: 8, 256>}, {transform_indices = @transform_1, window_bounds = array<i64: 8, 1>}, {transform_indices = @transform_2, window_bounds = array<i64: 8, 256>}]} {
    %c0 = arith.constant 0 : index
    %c0_0 = arith.constant 0 : index
    %0 = vector.load %arg2[%c0, %c0_0] : memref<8x256xf32, #tpu.memory_space<vmem>>, vector<8x256xf32>
    %c0_1 = arith.constant 0 : index
    %c0_2 = arith.constant 0 : index
    %1 = vector.load %arg3[%c0_1, %c0_2] : memref<8x1xf32, #tpu.memory_space<vmem>>, vector<8x1xf32>
    %2 = vector.broadcast %1 : vector<8x1xf32> to vector<8x256xf32>
    %3 = arith.mulf %0, %2 : vector<8x256xf32>
    %c0_3 = arith.constant 0 : index
    %c0_4 = arith.constant 0 : index
    %4 = vector.load %arg4[%c0_3, %c0_4] : memref<8x256xf32, #tpu.memory_space<vmem>>, vector<8x256xf32>
    tpu.vector_store %arg4[%c0_3, %c0_4], %3 {strides = array<i32>} : memref<8x256xf32, #tpu.memory_space<vmem>>, vector<8x256xf32>,
    return
  }
  func.func @transform_0(%arg0: i32, %arg1: i32) -> (i32, i32) {
    %c0_i32 = arith.constant 0 : i32
    return %arg0, %arg1 : i32, i32
  }
  func.func @transform_1(%arg0: i32, %arg1: i32) -> (i32, i32) {
    %c0_i32 = arith.constant 0 : i32
    %c0_i32_0 = arith.constant 0 : i32
    return %arg0, %c0_i32 : i32, i32
  }
  func.func @transform_2(%arg0: i32, %arg1: i32) -> (i32, i32) {
    %c0_i32 = arith.constant 0 : i32
    return %arg0, %arg1 : i32, i32
  }
}

</mosaic_0001>

<llo_original>
// kernel: tpu_custom_call.1
$region0: #{tpu_custom_call.1}
  #allocation0 [shape = 'u32[]', space=smem, size = 0x4, offset = 0x4, fixed_abs, tag = 'smem constant byte address 0x4 - core index']
  #allocation1 [shape = 'u32[144,128]{1,0:T(1,128)}', space=vmem, size = 0x12000, scoped, tag = 'internal scratch']
  %s0 = inlined_call_operand.hbm [shape: f32[8,256], index: 0, kind: input, shape index: {}]
  %s1 = inlined_call_operand.vmem [shape: f32[8,1], index: 1, kind: input, shape index: {}]
  %s2 = inlined_call_operand.hbm [shape: f32[8,256], index: 2, kind: output, shape index: {}]
  %s3 = sld [smem:[#allocation0]]
  $region22: #{tpu_custom_call.1} parent=0
    _
  %s5 = ssub.s32 1, %s3
  %s6 = scalar_select 0, %s5, %s3
  $region1: #{tpu_custom_call.1} parent=0
    #allocation2 [shape = 'u8[8192]{0}', space=vmem, size = 0x2000, scoped, tag = 'input window, operand 0, single buffered']
    #allocation3 [shape = 's32[1]{0}', space=sflag, size = 0x4, scoped, tag = 'scoped memory for tpu_custom_call.1']
    #allocation4 [shape = 's32[1]{0}', space=sflag, size = 0x4, scoped, tag = 'scoped memory for tpu_custom_call.1']
    #allocation5 [shape = 'u8[8192]{0}', space=vmem, size = 0x2000, scoped, tag = 'output window, operand 0, single buffered']
    %7 = vsyncpa [#allocation3], 0
    %8 = vsyncpa [#allocation4], 0
    // Predicated region
    $region2: #{tpu_custom_call.1} parent=1 // pred_check
      _
    $region3: #{tpu_custom_call.1} parent=1 // pred_check_branch
      %10 = sbr.rel (0) target = $region5
    $region4: #{tpu_custom_call.1} parent=1 // pred_region
      %s12 = ssub.s32 256, 256
      %13 = vsyncadd [#allocation3], %s12
      %s15 = sshll.u32 [#allocation2], 4
      %s16 = int_to_ptr.vmem [resolvable:$true] %s15
      %18 = dma.hbm_to_vmem [thread:$0]  %s0, 256, %s16, [#allocation3]
    $region5: #{tpu_custom_call.1} parent=1 // pred_fallthru
      _
    // Predicated region
    $region6: #{tpu_custom_call.1} parent=1 // pred_check
      _
    $region7: #{tpu_custom_call.1} parent=1 // pred_check_branch
      %20 = sbr.rel (0) target = $region9
    $region8: #{tpu_custom_call.1} parent=1 // pred_region
      _
    $region9: #{tpu_custom_call.1} parent=1 // pred_fallthru
      _
    // Predicated region
    $region10: #{tpu_custom_call.1} parent=1 // pred_check
      _
    $region11: #{tpu_custom_call.1} parent=1 // pred_check_branch
      %22 = sbr.rel (0) target = $region13
    $region12: #{tpu_custom_call.1} parent=1 // pred_region
      %23 = dma.done [#allocation3], 256
    $region13: #{tpu_custom_call.1} parent=1 // pred_fallthru
      _
    %v24 = vld [vmem:[#allocation2] sm:$0xff]
    %v25 = vld [vmem:[#allocation2 + $0x8] sm:$0xff]
    %v26 = vld [vmem:[%s1] sm:$0xff]
    %28 = vset.pattern.permute.xlu0 0
    %29 = vperm.xlu0 %28, %v26
    %v30 = vpop.permute.xlu0 %29
    %v32 = vmul.f32 %v24, %v30
    %v33 = vmul.f32 %v25, %v30
    %34 = vst [vmem:[#allocation5] sm:$0xff] %v32
    %35 = vst [vmem:[#allocation5 + $0x8] sm:$0xff] %v33
    // Predicated region
    $region14: #{tpu_custom_call.1} parent=1 // pred_check
      _
    $region15: #{tpu_custom_call.1} parent=1 // pred_check_branch
      %37 = sbr.rel (0) target = $region17
    $region16: #{tpu_custom_call.1} parent=1 // pred_region
      %s39 = ssub.s32 256, 256
      %40 = vsyncadd [#allocation4], %s39
      %s42 = sshll.u32 [#allocation5], 4
      %s43 = int_to_ptr.vmem [resolvable:$true] %s42
      %45 = dma.vmem_to_hbm [thread:$0]  %s43, 256, %s2, [#allocation4]
    $region17: #{tpu_custom_call.1} parent=1 // pred_fallthru
      _
    // Predicated region
    $region18: #{tpu_custom_call.1} parent=1 // pred_check
      _
    $region19: #{tpu_custom_call.1} parent=1 // pred_check_branch
      %47 = sbr.rel (0) target = $region21
    $region20: #{tpu_custom_call.1} parent=1 // pred_region
      %48 = dma.done [#allocation4], 256
    $region21: #{tpu_custom_call.1} parent=1 // pred_fallthru
      _
    %49 = vsyncpa [#allocation3], 1
    %50 = vsyncpa [#allocation4], 1

</llo_original>
